<compile_context>
chip_gen: v7x
topology: tpu7x:2x2x1
jax: 0.10.0
libtpu: 0.0.40
codegen_flags: <defaults>
</compile_context>

<pallas_src>
import functools
import math

import jax
import jax.numpy as jnp
from jax.experimental import pallas as pl
from jax.experimental.pallas import tpu as pltpu

D_IN, D_H1, D_H2, D_OUT = 3, 15, 15, 1

# Packed parameter slab (float32, shape (16, 32)):
#   [0:15,  0: 3]  fc1.weight  [15, 3]   (torch [out, in] layout)
#   [0:15,  8:23]  fc2.weight  [15, 15]
#   [15:16, 8:23]  fc3.weight  [1, 15]
#   [0:15, 24:25]  fc1.bias    [15, 1]
#   [0:15, 25:26]  fc2.bias    [15, 1]
#   [15:16,24:25]  fc3.bias    [1, 1]
_P_ROWS, _P_COLS = 16, 32


def _sigmoid(z):
    # One EUP op (tanh) instead of exp + reciprocal.
    return 0.5 * (jnp.tanh(0.5 * z) + 1.0)


def _mlp_kernel(xT_ref, p_ref, o_ref):
    # xT_ref: [3, Bt]  bf16  (batch on the lane axis)
    # p_ref : [16, 32] f32   packed weights + biases (grid-invariant)
    # o_ref : [1, Bt]  f32
    x = xT_ref[...]                                                # bf16 [3, Bt]

    w1 = p_ref[0:D_H1, 0:D_IN].astype(jnp.bfloat16)                # [15, 3]
    w2 = p_ref[0:D_H1, 8:8 + D_H1].astype(jnp.bfloat16)            # [15, 15]
    w3 = p_ref[D_H1:D_H1 + 1, 8:8 + D_H1].astype(jnp.bfloat16)     # [1, 15]
    b1 = p_ref[0:D_H1, 24:25]                                      # f32 [15, 1]
    b2 = p_ref[0:D_H1, 25:26]                                      # f32 [15, 1]
    b3 = p_ref[D_H1:D_H1 + 1, 24:25]                               # f32 [1, 1]

    z1 = jnp.dot(w1, x, preferred_element_type=jnp.float32) + b1   # f32 [15, Bt]
    h1 = _sigmoid(z1).astype(jnp.bfloat16)
    z2 = jnp.dot(w2, h1, preferred_element_type=jnp.float32) + b2  # f32 [15, Bt]
    h2 = _sigmoid(z2).astype(jnp.bfloat16)
    o_ref[...] = jnp.dot(w3, h2, preferred_element_type=jnp.float32) + b3


def pack_params(params):
    """Pack torch-layout (w[out,in], b[out]) params into one f32 slab."""
    w1, b1, w2, b2, w3, b3 = params
    p = jnp.zeros((_P_ROWS, _P_COLS), jnp.float32)
    p = p.at[0:D_H1, 0:D_IN].set(w1.astype(jnp.float32))
    p = p.at[0:D_H1, 8:8 + D_H1].set(w2.astype(jnp.float32))
    p = p.at[D_H1:D_H1 + 1, 8:8 + D_H1].set(w3.astype(jnp.float32))
    p = p.at[0:D_H1, 24:25].set(b1.astype(jnp.float32).reshape(D_H1, 1))
    p = p.at[0:D_H1, 25:26].set(b2.astype(jnp.float32).reshape(D_H2, 1))
    p = p.at[D_H1:D_H1 + 1, 24:25].set(b3.astype(jnp.float32).reshape(1, 1))
    return p


def _net_forward_feature_major(xT_bf16, p_slab, *, batch_tile):
    """Core pallas_call on feature-major x: xT [3, B] bf16 -> [1, B] f32."""
    D, B = xT_bf16.shape
    assert D == D_IN
    assert batch_tile % 128 == 0 and B % batch_tile == 0
    grid = (B // batch_tile,)
    return pl.pallas_call(
        _mlp_kernel,
        out_shape=jax.ShapeDtypeStruct((1, B), jnp.float32),
        grid=grid,
        in_specs=[
            pl.BlockSpec((D_IN, batch_tile), lambda i: (0, i)),
            pl.BlockSpec((_P_ROWS, _P_COLS), lambda i: (0, 0)),
        ],
        out_specs=pl.BlockSpec((1, batch_tile), lambda i: (0, i)),
        compiler_params=pltpu.CompilerParams(
            dimension_semantics=("parallel",),
        ),
    )(xT_bf16, p_slab)


def _default_batch_tile(B):
    # Lane-dense tile (multiple of 128); keep >= 2 grid steps whenever B >= 256
    # so both v7x TensorCores get work and the BlockSpec pipeline can overlap
    # DMA with compute. Cap at 2048 (VMEM is nowhere near a constraint here).
    return max(128, min(2048, pl.next_power_of_2(max(int(B), 2)) // 2))


@functools.partial(jax.jit, static_argnames=("batch_tile",))
def net_forward(x, params, *, batch_tile=None):
    """Torch-convention wrapper: x [B, 3] -> [B, 1] float32.

    For peak performance the producer should already hold x feature-major
    ([3, B], bf16) and call _net_forward_feature_major directly; here the
    transpose / cast / pad is cheap layout plumbing done in XLA.
    """
    B, D = x.shape
    assert D == D_IN
    if batch_tile is None:
        batch_tile = _default_batch_tile(B)
    B_pad = pl.cdiv(B, batch_tile) * batch_tile

    xT = x.T.astype(jnp.bfloat16)                 # feature-major, batch -> lanes
    if B_pad != B:
        xT = jnp.pad(xT, ((0, 0), (0, B_pad - B)))

    p_slab = pack_params(params)
    out = _net_forward_feature_major(xT, p_slab, batch_tile=batch_tile)
    return out[0, :B].reshape(B, 1)


def init_params(key):
    """Torch-default init (U[-1/sqrt(fan_in), +1/sqrt(fan_in)]), torch layout."""
    def linear(key, fan_in, fan_out):
        kw, kb = jax.random.split(key)
        bound = 1.0 / math.sqrt(fan_in)
        w = jax.random.uniform(kw, (fan_out, fan_in), jnp.float32, -bound, bound)
        b = jax.random.uniform(kb, (fan_out,), jnp.float32, -bound, bound)
        return w, b

    k1, k2, k3 = jax.random.split(key, 3)
    w1, b1 = linear(k1, D_IN, D_H1)
    w2, b2 = linear(k2, D_H1, D_H2)
    w3, b3 = linear(k3, D_H2, D_OUT)
    return (w1, b1, w2, b2, w3, b3)


def net_forward_ref(x, params, *, mirror_bf16=True):
    """Pure-JAX reference. mirror_bf16=True mimics the kernel's bf16 casts."""
    w1, b1, w2, b2, w3, b3 = params
    if mirror_bf16:
        q = lambda a: a.astype(jnp.bfloat16).astype(jnp.float32)
    else:
        q = lambda a: a
    h = q(x.astype(jnp.float32))
    h = jax.nn.sigmoid(h @ q(w1).T + b1)
    h = jax.nn.sigmoid(q(h) @ q(w2).T + b2)
    return q(h) @ q(w3).T + b3


if __name__ == "__main__":
    key = jax.random.PRNGKey(0)
    kx, kp = jax.random.split(key)

    # Small demo batch, but large enough to put 2 lane-dense (256-wide) tiles
    # on the grid so pipelining / dual-TC sharding is exercised.
    B = 512
    x = jax.random.normal(kx, (B, D_IN), jnp.float32)
    params = init_params(kp)

    out = jax.block_until_ready(net_forward(x, params))
    assert out.shape == (B, D_OUT)

    ref = net_forward_ref(x, params)
    max_err = float(jnp.max(jnp.abs(out - ref)))
    assert jnp.allclose(out, ref, atol=1e-2, rtol=1e-2), max_err

    print("KERNEL_OK")
</pallas_src>

<mosaic_0001>
module attributes {stable_mosaic.version = 11 : i64} {
  func.func @_mlp_kernel(%arg0: i32, %arg1: memref<3x256xbf16, #tpu.memory_space<vmem>>, %arg2: memref<16x32xf32, #tpu.memory_space<vmem>>, %arg3: memref<1x256xf32, #tpu.memory_space<vmem>>) attributes {dimension_semantics = [#tpu.dimension_semantics<parallel>], iteration_bounds = array<i64: 2>, scalar_prefetch = 0 : i64, scratch_operands = 0 : i64, tpu.core_type = #tpu.core_type<tc>, window_params = [{transform_indices = @transform_0, window_bounds = array<i64: 3, 256>}, {pipeline_mode = #tpu.pipeline_mode<synchronous>, transform_indices = @transform_1, window_bounds = array<i64: 16, 32>}, {transform_indices = @transform_2, window_bounds = array<i64: 1, 256>}]} {
    %c0 = arith.constant 0 : index
    %c0_0 = arith.constant 0 : index
    %0 = vector.load %arg1[%c0, %c0_0] : memref<3x256xbf16, #tpu.memory_space<vmem>>, vector<3x256xbf16>
    %c0_1 = arith.constant 0 : index
    %c0_2 = arith.constant 0 : index
    %1 = vector.load %arg2[%c0_1, %c0_2] : memref<16x32xf32, #tpu.memory_space<vmem>>, vector<15x3xf32>
    %2 = arith.truncf %1 : vector<15x3xf32> to vector<15x3xbf16>
    %c0_3 = arith.constant 0 : index
    %c8 = arith.constant 8 : index
    %3 = vector.load %arg2[%c0_3, %c8] : memref<16x32xf32, #tpu.memory_space<vmem>>, vector<15x15xf32>
    %4 = arith.truncf %3 : vector<15x15xf32> to vector<15x15xbf16>
    %c15 = arith.constant 15 : index
    %c8_4 = arith.constant 8 : index
    %5 = vector.load %arg2[%c15, %c8_4] : memref<16x32xf32, #tpu.memory_space<vmem>>, vector<1x15xf32>
    %6 = arith.truncf %5 : vector<1x15xf32> to vector<1x15xbf16>
    %c0_5 = arith.constant 0 : index
    %c24 = arith.constant 24 : index
    %7 = vector.load %arg2[%c0_5, %c24] : memref<16x32xf32, #tpu.memory_space<vmem>>, vector<15x1xf32>
    %c0_6 = arith.constant 0 : index
    %c25 = arith.constant 25 : index
    %8 = vector.load %arg2[%c0_6, %c25] : memref<16x32xf32, #tpu.memory_space<vmem>>, vector<15x1xf32>
    %c15_7 = arith.constant 15 : index
    %c24_8 = arith.constant 24 : index
    %9 = vector.load %arg2[%c15_7, %c24_8] : memref<16x32xf32, #tpu.memory_space<vmem>>, vector<1x1xf32>
    %cst = arith.constant dense<0.000000e+00> : vector<15x256xf32>
    %10 = tpu.matmul %2, %0, %cst {dimension_numbers = #tpu.dot_dimension_numbers<[1], [0], [0], [1], [0, 0, 1, 1], [], []>} : vector<15x3xbf16>, vector<3x256xbf16>, vector<15x256xf32> -> vector<15x256xf32>
    %11 = vector.broadcast %7 : vector<15x1xf32> to vector<15x256xf32>
    %12 = arith.addf %10, %11 : vector<15x256xf32>
    %cst_9 = arith.constant 5.000000e-01 : f32
    %13 = vector.broadcast %cst_9 : f32 to vector<15x256xf32>
    %14 = arith.mulf %13, %12 : vector<15x256xf32>
    %15 = math.tanh %14 : vector<15x256xf32>
    %cst_10 = arith.constant 1.000000e+00 : f32
    %16 = vector.broadcast %cst_10 : f32 to vector<15x256xf32>
    %17 = arith.addf %15, %16 : vector<15x256xf32>
    %cst_11 = arith.constant 5.000000e-01 : f32
    %18 = vector.broadcast %cst_11 : f32 to vector<15x256xf32>
    %19 = arith.mulf %18, %17 : vector<15x256xf32>
    %20 = arith.truncf %19 : vector<15x256xf32> to vector<15x256xbf16>
    %cst_12 = arith.constant dense<0.000000e+00> : vector<15x256xf32>
    %21 = tpu.matmul %4, %20, %cst_12 {dimension_numbers = #tpu.dot_dimension_numbers<[1], [0], [0], [1], [0, 0, 1, 1], [], []>} : vector<15x15xbf16>, vector<15x256xbf16>, vector<15x256xf32> -> vector<15x256xf32>
    %22 = vector.broadcast %8 : vector<15x1xf32> to vector<15x256xf32>
    %23 = arith.addf %21, %22 : vector<15x256xf32>
    %cst_13 = arith.constant 5.000000e-01 : f32
    %24 = vector.broadcast %cst_13 : f32 to vector<15x256xf32>
    %25 = arith.mulf %24, %23 : vector<15x256xf32>
    %26 = math.tanh %25 : vector<15x256xf32>
    %cst_14 = arith.constant 1.000000e+00 : f32
    %27 = vector.broadcast %cst_14 : f32 to vector<15x256xf32>
    %28 = arith.addf %26, %27 : vector<15x256xf32>
    %cst_15 = arith.constant 5.000000e-01 : f32
    %29 = vector.broadcast %cst_15 : f32 to vector<15x256xf32>
    %30 = arith.mulf %29, %28 : vector<15x256xf32>
    %31 = arith.truncf %30 : vector<15x256xf32> to vector<15x256xbf16>
    %cst_16 = arith.constant dense<0.000000e+00> : vector<1x256xf32>
    %32 = tpu.matmul %6, %31, %cst_16 {dimension_numbers = #tpu.dot_dimension_numbers<[1], [0], [0], [1], [0, 0, 1, 1], [], []>} : vector<1x15xbf16>, vector<15x256xbf16>, vector<1x256xf32> -> vector<1x256xf32>
    %33 = vector.broadcast %9 : vector<1x1xf32> to vector<1x256xf32>
    %34 = arith.addf %32, %33 : vector<1x256xf32>
    %c0_17 = arith.constant 0 : index
    %c0_18 = arith.constant 0 : index
    %35 = vector.load %arg3[%c0_17, %c0_18] : memref<1x256xf32, #tpu.memory_space<vmem>>, vector<1x256xf32>
    tpu.vector_store %arg3[%c0_17, %c0_18], %34 {strides = array<i32>} : memref<1x256xf32, #tpu.memory_space<vmem>>, vector<1x256xf32>,
    return
  }
  func.func @transform_0(%arg0: i32) -> (i32, i32) {
    %c0_i32 = arith.constant 0 : i32
    %c0_i32_0 = arith.constant 0 : i32
    return %c0_i32, %arg0 : i32, i32
  }
  func.func @transform_1(%arg0: i32) -> (i32, i32) {
    %c0_i32 = arith.constant 0 : i32
    %c0_i32_0 = arith.constant 0 : i32
    %c0_i32_1 = arith.constant 0 : i32
    return %c0_i32, %c0_i32_0 : i32, i32
  }
  func.func @transform_2(%arg0: i32) -> (i32, i32) {
    %c0_i32 = arith.constant 0 : i32
    %c0_i32_0 = arith.constant 0 : i32
    return %c0_i32, %arg0 : i32, i32
  }
}

</mosaic_0001>

<llo_original>
// kernel: net_forward.1
$region0: #{net_forward.1}
  #allocation0 [shape = 'u32[]', space=smem, size = 0x4, offset = 0x4, fixed_abs, tag = 'smem constant byte address 0x4 - core index']
  #allocation1 [shape = 'u32[144,128]{1,0:T(1,128)}', space=vmem, size = 0x12000, scoped, tag = 'internal scratch']
  %s0 = inlined_call_operand.vmem [shape: bf16[3,512], index: 0, kind: input, shape index: {}]
  %s1 = inlined_call_operand.vmem [shape: f32[16,32], index: 1, kind: input, shape index: {}]
  %s2 = inlined_call_operand.hbm [shape: f32[1,512], index: 2, kind: output, shape index: {}]
  %s3 = sld [smem:[#allocation0]]
  $region41: #{net_forward.1} parent=0
    _
  %s5 = ssub.s32 1, %s3
  %s6 = scalar_select 0, %s5, %s3
  $region1: #{net_forward.1} parent=0
    #allocation2 [shape = 'u8[2048]{0}', space=vmem, size = 0x800, scoped, tag = 'output window, operand 0']
    #allocation3 [shape = 's32[2]{0}', space=sflag, size = 0x8, scoped, tag = 'scoped memory for net_forward.1']
    %7 = vsyncpa [#allocation3], 0
    %s8 = scalar_lea.sflag [#allocation3], 1
    %9 = vsyncpa %s8, 0
    loop: start=0, step=1, limit=4
    $region2: #{net_forward.1} parent=1 // loop_pre_header
      _
    $region3: #{net_forward.1} parent=1 // loop_header
      %s11 = sphi 0, %s15
      %p12 = scmp.ge.s32.totalorder %s11, 4
      %s21 = sphi 0, %s23
      %s24 = sphi 0, %s21
      %s25 = sphi 0, %s24
      %s41 = sphi 0, %s25
      %s45 = sphi 0, %s45
      %s47 = sphi 0, %s45
      %s48 = sphi 0, %s47
      %s62 = sphi 0, %s48
      %s68 = sphi 0, %s70
      %s71 = sphi 0, %s68
      %s72 = sphi 0, %s71
      %s88 = sphi 0, %s72
    $region4: #{net_forward.1} parent=1 // loop_header_branch
      %14 = sbr.rel (%p12) target = $region8
    $region5: #{net_forward.1} parent=1 // loop_body
      %s16 = ssub.s32 %s11, 1
      %s17 = ssub.s32 %s11, 2
      %s18 = sadd.s32 %s11, 1
      %s19 = ssub.s32 %s11, %s18
      %p20 = scmp.eq.s32.totalorder %s19, 0
      %s22 = sadd.s32 %s21, 1
      %s23 = scalar_select %p20, %s21, %s22
      %p26 = pneg %p20
      %p27 = scmp.eq.s32.totalorder %s11, 1
      %p28 = por %p26, %p27
      %p29 = scmp.ne.s32.totalorder %s21, %s24
      %p30 = scmp.eq.s32.totalorder %s11, 0
      %p31 = por %p29, %p30
      %p32 = scmp.ne.s32.totalorder %s21, %s24
      %p33 = scmp.eq.s32.totalorder %s16, 1
      %p34 = por %p32, %p33
      %p35 = scmp.ne.s32.totalorder %s24, %s25
      %p36 = scmp.eq.s32.totalorder %s16, 0
      %p37 = por %p35, %p36
      %p38 = scmp.ne.s32.totalorder %s24, %s25
      %p39 = scmp.eq.s32.totalorder %s17, 1
      %p40 = por %p38, %p39
      %p42 = scmp.ne.s32.totalorder %s25, %s41
      %p43 = scmp.eq.s32.totalorder %s17, 0
      %p44 = por %p42, %p43
      %s46 = sadd.s32 %s45, 1
      %p49 = scmp.eq.s32.totalorder %s11, 1
      %p50 = scmp.ne.s32.totalorder %s45, %s47
      %p51 = scmp.eq.s32.totalorder %s11, 0
      %p52 = por %p50, %p51
      %p53 = scmp.ne.s32.totalorder %s45, %s47
      %p54 = scmp.eq.s32.totalorder %s16, 1
      %p55 = por %p53, %p54
      %p56 = scmp.ne.s32.totalorder %s47, %s48
      %p57 = scmp.eq.s32.totalorder %s16, 0
      %p58 = por %p56, %p57
      %p59 = scmp.ne.s32.totalorder %s47, %s48
      %p60 = scmp.eq.s32.totalorder %s17, 1
      %p61 = por %p59, %p60
      %p63 = scmp.ne.s32.totalorder %s48, %s62
      %p64 = scmp.eq.s32.totalorder %s17, 0
      %p65 = por %p63, %p64
      %s66 = ssub.s32 %s11, %s18
      %p67 = scmp.eq.s32.totalorder %s66, 0
      %s69 = sadd.s32 %s68, 1
      %s70 = scalar_select %p67, %s68, %s69
      %p73 = pneg %p67
      %p74 = scmp.eq.s32.totalorder %s11, 1
      %p75 = por %p73, %p74
      %p76 = scmp.ne.s32.totalorder %s68, %s71
      %p77 = scmp.eq.s32.totalorder %s11, 0
      %p78 = por %p76, %p77
      %p79 = scmp.ne.s32.totalorder %s68, %s71
      %p80 = scmp.eq.s32.totalorder %s16, 1
      %p81 = por %p79, %p80
      %p82 = scmp.ne.s32.totalorder %s71, %s72
      %p83 = scmp.eq.s32.totalorder %s16, 0
      %p84 = por %p82, %p83
      %p85 = scmp.ne.s32.totalorder %s71, %s72
      %p86 = scmp.eq.s32.totalorder %s17, 1
      %p87 = por %p85, %p86
      %p89 = scmp.ne.s32.totalorder %s72, %s88
      %p90 = scmp.eq.s32.totalorder %s17, 0
      %p91 = por %p89, %p90
      %p92 = scmp.le.s32.totalorder 1, %s11
      %p93 = scmp.lt.s32.totalorder %s11, 3
      %p94 = pnand %p92, %p93
      %p95 = pneg %p94
      // Predicated region
      $region9: #{net_forward.1} parent=5 // pred_check
        _
      $region10: #{net_forward.1} parent=5 // pred_check_branch
        %97 = sbr.rel (%p94) target = $region12
      $region11: #{net_forward.1} parent=5 // pred_region
        %s98 = ssub.s32 %s11, 1
        // Predicated region
        $region13: #{net_forward.1} parent=11 // pred_check
          %p99 = pneg %p58
        $region14: #{net_forward.1} parent=11 // pred_check_branch
          %101 = sbr.rel (%p99) target = $region16
        $region15: #{net_forward.1} parent=11 // pred_region
          _
        $region16: #{net_forward.1} parent=11 // pred_fallthru
          _
      $region12: #{net_forward.1} parent=5 // pred_fallthru
        _
      %p102 = scmp.lt.s32.totalorder %s11, 2
      // Predicated region
      $region17: #{net_forward.1} parent=5 // pred_check
        %p103 = pneg %p102
      $region18: #{net_forward.1} parent=5 // pred_check_branch
        %105 = sbr.rel (%p103) target = $region20
      $region19: #{net_forward.1} parent=5 // pred_region
        // Predicated region
        $region21: #{net_forward.1} parent=19 // pred_check
          %p106 = pneg %p31
        $region22: #{net_forward.1} parent=19 // pred_check_branch
          %108 = sbr.rel (%p106) target = $region24
        $region23: #{net_forward.1} parent=19 // pred_region
          %s109 = smul.u32 2, %s11
          %p110 = scmp.lt.s32.totalorder %s109, 3
          %s111 = scalar_select %p110, %s109, 3
          %s112 = smul.addr %s111, 2
          %s113 = scalar_lea.vmem %s0, %s112
          %s114 = smul.u32 2, %s11
        $region24: #{net_forward.1} parent=19 // pred_fallthru
          _
      $region20: #{net_forward.1} parent=5 // pred_fallthru
        _
      %p115 = scmp.le.s32.totalorder 1, %s11
      %p116 = scmp.lt.s32.totalorder %s11, 3
      %p117 = pnand %p115, %p116
      %p118 = pneg %p117
      // Predicated region
      $region25: #{net_forward.1} parent=5 // pred_check
        _
      $region26: #{net_forward.1} parent=5 // pred_check_branch
        %120 = sbr.rel (%p117) target = $region28
      $region27: #{net_forward.1} parent=5 // pred_region
        %s121 = ssub.s32 %s11, 1
        %s122 = smul.u32 2, %s16
        %p123 = scmp.lt.s32.totalorder %s122, 3
        %s124 = scalar_select %p123, %s122, 3
        %s125 = smul.addr %s124, 2
        %s126 = scalar_lea.vmem %s0, %s125
        %p127 = pneg %p37
        %p128 = pneg %p34
        %p129 = pneg %p58
        %p130 = pneg %p55
        %p131 = pneg %p84
        %p132 = pneg %p81
        %s133 = sand.u32 %s71, 1
        %s134 = scalar_lea.sflag [#allocation3], %s133
        %s135 = sand.u32 %s71, 1
        %s136 = smul.addr %s135, 2
        %s137 = scalar_lea.vmem [#allocation2], %s136
        %s138 = smul.u32 2, %s16
        %p139 = scmp.lt.s32.totalorder %s138, 3
        %s140 = scalar_select %p139, %s138, 3
        %s141 = smul.addr %s140, 2
        %s142 = scalar_lea.vmem %s0, %s141
        %s143 = smul.u32 2, %s16
        %s144 = smul.u32 2, %s16
        %v146 = vld [vmem:[%s142] sm:$0xf]
        %v147 = vld [vmem:[%s1] sm:$0xff]
        %v148 = vld [vmem:[%s1 + $0x8] sm:$0x7f]
        %v149 = vpack.c.bf16 %v148, %v147
        %v150 = vld [vmem:[%s1 + $0xf] sm:$0x1]
        %v151 = vpack.c.bf16 %v150, %v150
        %153 = vset.pattern.permute.xlu0 24
        %154 = vperm.xlu0 %153, %v147
        %v155 = vpop.permute.xlu0 %154
        %158 = vset.pattern.permute.xlu0 24
        %159 = vperm.xlu0 %158, %v148
        %v160 = vpop.permute.xlu0 %159
        %v164 = vunpack.c.l.s4 1983009808
        %v165 = vunpack.c.0.s8 %v164
        %v166 = vlaneseq
        %v167 = vshrl.u32 %v166, 7
        %v168 = vsub.s32 %v165, %v167
        %v169 = vrot.slane %v146, %v168
        %v170 = vcombine.high %v169, %v169
        %vm171 = vcmask 23552
        %v173 = vsel %vm171, %v149, 0
        %vm175 = vcmask 1040384
        %vm176 = vcmask 1041408
        %v177 = vsel %vm175, 4294967295, 65535
        %v178 = vsel %vm176, %v177, 0
        %v180 = vand.u32 %v169, %v178
        %v183 = vand.u32 %v170, %v178
        %185 = vmatprep.subr.bf16.mxu0 %v183
        %186 = vmatpush1.bf16.msra.mxu0 %v180
        %187 = vmatprep.subr.bf16.mxu0 0
        %188 = vmatpush1.bf16.msra.mxu0 0
        %189 = vmatprep.subr.bf16.mxu0 0
        %190 = vmatpush1.bf16.msra.mxu0 0
        %191 = vmatprep.subr.bf16.mxu0 0
        %192 = vmatpush1.bf16.msra.mxu0 0
        %193 = vmatprep.subr.bf16.mxu0 0
        %194 = vmatpush1.bf16.msra.mxu0 0
        %195 = vmatprep.subr.bf16.mxu0 0
        %196 = vmatpush1.bf16.msra.mxu0 0
        %197 = vmatprep.subr.bf16.mxu0 0
        %198 = vmatpush1.bf16.msra.mxu0 0
        %199 = vmatprep.subr.bf16.mxu0 0
        %200 = vmatpush1.bf16.msra.mxu0 0
        %201 = vmatprep.subr.bf16.mxu0 0
        %202 = vmatpush1.bf16.msra.mxu0 0
        %203 = vmatprep.subr.bf16.mxu0 0
        %204 = vmatpush1.bf16.msra.mxu0 0
        %205 = vmatprep.subr.bf16.mxu0 0
        %206 = vmatpush1.bf16.msra.mxu0 0
        %207 = vmatprep.subr.bf16.mxu0 0
        %208 = vmatpush1.bf16.msra.mxu0 0
        %209 = vmatprep.subr.bf16.mxu0 0
        %210 = vmatpush1.bf16.msra.mxu0 0
        %211 = vmatprep.subr.bf16.mxu0 0
        %212 = vmatpush1.bf16.msra.mxu0 0
        %213 = vmatprep.subr.bf16.mxu0 0
        %214 = vmatpush1.bf16.msra.mxu0 0
        %215 = vmatprep.subr.bf16.mxu0 0
        %216 = vmatpush1.bf16.msra.mxu0 0
        %217 = vmatprep.mubr.bf16.mxu0 0
        %218 = vmatmul.mubr.bf16.gmra.mrb[0].mxu0 %v173
        %v219 = vpop.f32.mrb[0].mxu0
        %v220 = vadd.f32 %v155, %v219
        %v221 = vpop.f32.mrb[0].mxu0
        %v222 = vadd.f32 %v155, %v221
        %v223 = vpop.f32.mrb[0].mxu0
        %v224 = vadd.f32 %v160, %v223
        %v225 = vpop.f32.mrb[0].mxu0
        %v226 = vadd.f32 %v160, %v225
        %227 = vdwg.mxu0
        %v228 = vmul.f32 %v220, 0.5
        %v229 = vmul.f32 %v222, 0.5
        %v230 = vmul.f32 %v224, 0.5
        %v231 = vmul.f32 %v226, 0.5
        %v232 = vtanh.pop %v228
        %v233 = vtanh.pop %v229
        %v234 = vtanh.pop %v230
        %v235 = vtanh.pop %v231
        %v236 = vadd.f32 %v232, 1.0
        %v237 = vadd.f32 %v233, 1.0
        %v238 = vadd.f32 %v234, 1.0
        %v239 = vadd.f32 %v235, 1.0
        %v240 = vmul.f32 %v236, 0.5
        %v241 = vmul.f32 %v237, 0.5
        %v242 = vmul.f32 %v238, 0.5
        %v243 = vmul.f32 %v239, 0.5
        %v244 = vpack.c.bf16 %v242, %v240
        %v245 = vpack.c.bf16 %v243, %v241
        %246 = vset.pattern.permute.xlu0 25
        %247 = vperm.xlu0 %246, %v147
        %v248 = vpop.permute.xlu0 %247
        %250 = vset.pattern.permute.xlu0 25
        %251 = vperm.xlu0 %250, %v148
        %v252 = vpop.permute.xlu0 %251
        %255 = vrot.lane.b32.xlu0 %v149, 120
        %v256 = vpop.permute.xlu0 %255
        %vm257 = vcmask 121856
        %v259 = vsel %vm257, %v256, 0
        %vm261 = vcmask 1046528
        %vm262 = vcmask 1047552
        %v263 = vsel %vm261, 4294967295, 65535
        %v264 = vsel %vm262, %v263, 0
        %v266 = vand.u32 %v244, %v264
        %v269 = vand.u32 %v245, %v264
        %271 = vmatprep.subr.bf16.mxu0 %v269
        %272 = vmatpush1.bf16.msra.mxu0 %v266
        %273 = vmatprep.subr.bf16.mxu0 0
        %274 = vmatpush1.bf16.msra.mxu0 0
        %275 = vmatprep.subr.bf16.mxu0 0
        %276 = vmatpush1.bf16.msra.mxu0 0
        %277 = vmatprep.subr.bf16.mxu0 0
        %278 = vmatpush1.bf16.msra.mxu0 0
        %279 = vmatprep.subr.bf16.mxu0 0
        %280 = vmatpush1.bf16.msra.mxu0 0
        %281 = vmatprep.subr.bf16.mxu0 0
        %282 = vmatpush1.bf16.msra.mxu0 0
        %283 = vmatprep.subr.bf16.mxu0 0
        %284 = vmatpush1.bf16.msra.mxu0 0
        %285 = vmatprep.subr.bf16.mxu0 0
        %286 = vmatpush1.bf16.msra.mxu0 0
        %287 = vmatprep.subr.bf16.mxu0 0
        %288 = vmatpush1.bf16.msra.mxu0 0
        %289 = vmatprep.subr.bf16.mxu0 0
        %290 = vmatpush1.bf16.msra.mxu0 0
        %291 = vmatprep.subr.bf16.mxu0 0
        %292 = vmatpush1.bf16.msra.mxu0 0
        %293 = vmatprep.subr.bf16.mxu0 0
        %294 = vmatpush1.bf16.msra.mxu0 0
        %295 = vmatprep.subr.bf16.mxu0 0
        %296 = vmatpush1.bf16.msra.mxu0 0
        %297 = vmatprep.subr.bf16.mxu0 0
        %298 = vmatpush1.bf16.msra.mxu0 0
        %299 = vmatprep.subr.bf16.mxu0 0
        %300 = vmatpush1.bf16.msra.mxu0 0
        %301 = vmatprep.subr.bf16.mxu0 0
        %302 = vmatpush1.bf16.msra.mxu0 0
        %303 = vmatprep.mubr.bf16.mxu0 0
        %304 = vmatmul.mubr.bf16.gmra.mrb[0].mxu0 %v259
        %v305 = vpop.f32.mrb[0].mxu0
        %v306 = vadd.f32 %v248, %v305
        %v307 = vpop.f32.mrb[0].mxu0
        %v308 = vadd.f32 %v248, %v307
        %v309 = vpop.f32.mrb[0].mxu0
        %v310 = vadd.f32 %v252, %v309
        %v311 = vpop.f32.mrb[0].mxu0
        %v312 = vadd.f32 %v252, %v311
        %313 = vdwg.mxu0
        %v314 = vmul.f32 %v306, 0.5
        %v315 = vmul.f32 %v308, 0.5
        %v316 = vmul.f32 %v310, 0.5
        %v317 = vmul.f32 %v312, 0.5
        %v318 = vtanh.pop %v314
        %v319 = vtanh.pop %v315
        %v320 = vtanh.pop %v316
        %v321 = vtanh.pop %v317
        %v322 = vadd.f32 %v318, 1.0
        %v323 = vadd.f32 %v319, 1.0
        %v324 = vadd.f32 %v320, 1.0
        %v325 = vadd.f32 %v321, 1.0
        %v326 = vmul.f32 %v322, 0.5
        %v327 = vmul.f32 %v323, 0.5
        %v328 = vmul.f32 %v324, 0.5
        %v329 = vmul.f32 %v325, 0.5
        %v330 = vpack.c.bf16 %v328, %v326
        %v331 = vpack.c.bf16 %v329, %v327
        %333 = vset.pattern.permute.xlu0 24
        %334 = vperm.xlu0 %333, %v150
        %v335 = vpop.permute.xlu0 %334
        %338 = vrot.lane.b32.xlu0 %v151, 120
        %v339 = vpop.permute.xlu0 %338
        %v341 = vsel %vm257, %v339, 0
        %v344 = vand.u32 %v330, %v264
        %v347 = vand.u32 %v331, %v264
        %349 = vmatprep.subr.bf16.mxu0 %v347
        %350 = vmatpush1.bf16.msra.mxu0 %v344
        %351 = vmatprep.subr.bf16.mxu0 0
        %352 = vmatpush1.bf16.msra.mxu0 0
        %353 = vmatprep.subr.bf16.mxu0 0
        %354 = vmatpush1.bf16.msra.mxu0 0
        %355 = vmatprep.subr.bf16.mxu0 0
        %356 = vmatpush1.bf16.msra.mxu0 0
        %357 = vmatprep.subr.bf16.mxu0 0
        %358 = vmatpush1.bf16.msra.mxu0 0
        %359 = vmatprep.subr.bf16.mxu0 0
        %360 = vmatpush1.bf16.msra.mxu0 0
        %361 = vmatprep.subr.bf16.mxu0 0
        %362 = vmatpush1.bf16.msra.mxu0 0
        %363 = vmatprep.subr.bf16.mxu0 0
        %364 = vmatpush1.bf16.msra.mxu0 0
        %365 = vmatprep.subr.bf16.mxu0 0
        %366 = vmatpush1.bf16.msra.mxu0 0
        %367 = vmatprep.subr.bf16.mxu0 0
        %368 = vmatpush1.bf16.msra.mxu0 0
        %369 = vmatprep.subr.bf16.mxu0 0
        %370 = vmatpush1.bf16.msra.mxu0 0
        %371 = vmatprep.subr.bf16.mxu0 0
        %372 = vmatpush1.bf16.msra.mxu0 0
        %373 = vmatprep.subr.bf16.mxu0 0
        %374 = vmatpush1.bf16.msra.mxu0 0
        %375 = vmatprep.subr.bf16.mxu0 0
        %376 = vmatpush1.bf16.msra.mxu0 0
        %377 = vmatprep.subr.bf16.mxu0 0
        %378 = vmatpush1.bf16.msra.mxu0 0
        %379 = vmatprep.subr.bf16.mxu0 0
        %380 = vmatpush1.bf16.msra.mxu0 0
        %381 = vmatprep.mubr.bf16.mxu0 0
        %382 = vmatmul.mubr.bf16.gmra.mrb[0].mxu0 %v341
        %v383 = vpop.f32.mrb[0].mxu0
        %v384 = vadd.f32 %v335, %v383
        %v385 = vpop.f32.mrb[0].mxu0
        %v386 = vadd.f32 %v335, %v385
        %v387 = vpop.f32.mrb[0].mxu0
        %v388 = vpop.f32.mrb[0].mxu0
        %389 = vdwg.mxu0
        %v392 = vcombine.low %v384, %v386
        %v394 = vunpack.c.l.s4 1966171168
        %v395 = vunpack.c.0.s8 %v394
        %v396 = vlaneseq
        %v397 = vshrl.u32 %v396, 7
        %v398 = vsub.s32 %v395, %v397
        %v399 = vrot.slane %v392, %v398
        %v401 = vunpack.c.l.s4 1966171168
        %v402 = vunpack.c.0.s8 %v401
        %v403 = vlaneseq
        %v404 = vshrl.u32 %v403, 7
        %v405 = vsub.s32 %v402, %v404
        %v406 = vrot.slane %v399, %v405
        %v408 = vlaneseq
        %vm409 = vcmp.ge.s32.totalorder %v408, 0
        %vm410 = vcmp.lt.s32.totalorder %v408, 256
        %vm411 = vmand %vm409, %vm410
        %412 = vst.msk [vmem:[%s137] sm:$0x3] %vm411, %v406
        %s413 = sand.u32 %s71, 1
        %s414 = scalar_lea.sflag [#allocation3], %s413
        %s415 = sand.u32 %s71, 1
        %s416 = smul.addr %s415, 2
        %s417 = scalar_lea.vmem [#allocation2], %s416
        // Predicated region
        $region29: #{net_forward.1} parent=27 // pred_check
          %p418 = pneg %p81
        $region30: #{net_forward.1} parent=27 // pred_check_branch
          %420 = sbr.rel (%p418) target = $region32
        $region31: #{net_forward.1} parent=27 // pred_region
          %s421 = smul.u32 2, %s16
          %s423 = ssub.s32 32, 32
          %424 = vsyncadd %s414, %s423
          %s425 = smul.addr %s421, 16
          %s426 = scalar_lea.hbm %s2, %s425
          %s428 = sshll.u32 %s417, 4
          %s429 = int_to_ptr.vmem [resolvable:$true] %s428
          %431 = dma.vmem_to_hbm [thread:$0]  %s429, 32, %s426, %s414
        $region32: #{net_forward.1} parent=27 // pred_fallthru
          _
      $region28: #{net_forward.1} parent=5 // pred_fallthru
        _
      %p432 = scmp.le.s32.totalorder 2, %s11
      // Predicated region
      $region33: #{net_forward.1} parent=5 // pred_check
        %p433 = pneg %p432
      $region34: #{net_forward.1} parent=5 // pred_check_branch
        %435 = sbr.rel (%p433) target = $region36
      $region35: #{net_forward.1} parent=5 // pred_region
        %s436 = ssub.s32 %s11, 2
        // Predicated region
        $region37: #{net_forward.1} parent=35 // pred_check
          %p437 = pneg %p87
        $region38: #{net_forward.1} parent=35 // pred_check_branch
          %439 = sbr.rel (%p437) target = $region40
        $region39: #{net_forward.1} parent=35 // pred_region
          %s440 = sand.u32 %s72, 1
          %s441 = scalar_lea.sflag [#allocation3], %s440
          %s442 = sand.u32 %s72, 1
          %s443 = smul.addr %s442, 2
          %s444 = scalar_lea.vmem [#allocation2], %s443
          %445 = dma.done %s441, 32
        $region40: #{net_forward.1} parent=35 // pred_fallthru
          _
      $region36: #{net_forward.1} parent=5 // pred_fallthru
        _
    $region6: #{net_forward.1} parent=1 // loop_footer
      %s15 = sadd.s32 1, %s11
    $region7: #{net_forward.1} parent=1 // loop_footer_branch
      %10 = sbr.rel target = $region3
    $region8: #{net_forward.1} parent=1 // loop_exit
      _
    %446 = vsyncpa [#allocation3], 1
    %s447 = scalar_lea.sflag [#allocation3], 1
    %448 = vsyncpa %s447, 1

</llo_original>
